<compile_context>
chip_gen: v5e
topology: v5e:2x2
jax: 0.10.0
libtpu: 0.0.40
codegen_flags: <defaults>
</compile_context>

<pallas_src>
import functools

import jax
import jax.numpy as jnp
from jax.experimental import pallas as pl
from jax.experimental.pallas import tpu as pltpu


def _round_up(n, m):
    return ((n + m - 1) // m) * m


def _coupling_kernel(n_mid,
                     sign_ref,
                     x1_ref, x2_ref,
                     w_in_ref, b_in_ref,
                     w_mid_ref, b_mid_ref,
                     w_out_ref, b_out_ref,
                     x2_out_ref):
    # in_net: Linear(D/2 -> M) + ReLU   (bf16 operands, f32 accumulate)
    h = jnp.dot(x1_ref[...].astype(jnp.bfloat16), w_in_ref[...],
                preferred_element_type=jnp.float32)
    h = jnp.maximum(h + b_in_ref[...], 0.0)
    # mid_net: (hidden - 1) x [Linear(M -> M) + ReLU]  (statically unrolled)
    for i in range(n_mid):
        h = jnp.dot(h.astype(jnp.bfloat16), w_mid_ref[i],
                    preferred_element_type=jnp.float32)
        h = jnp.maximum(h + b_mid_ref[i], 0.0)
    # out_net: Linear(M -> D/2), no activation
    shift = jnp.dot(h.astype(jnp.bfloat16), w_out_ref[...],
                    preferred_element_type=jnp.float32)
    shift = shift + b_out_ref[...]

    sign = sign_ref[0]  # +1.0 forward, -1.0 reverse (shared compiled kernel)
    x2_out_ref[...] = (x2_ref[...].astype(jnp.float32)
                       + sign * shift).astype(x2_out_ref.dtype)


def additive_coupling_forward(x, log_det_J, params, mask_config,
                              reverse=False, block_b=256):
    """Pallas implementation of AdditiveCoupling.forward.

    Args:
      x: [B, D] float32 input.
      log_det_J: scalar (passed through unchanged, as in the PyTorch module).
      params: dict with w_in [D/2, M], b_in [M], w_mid [H-1, M, M],
              b_mid [H-1, M], w_out [M, D/2], b_out [D/2].
      mask_config: 1 -> transform odd units, 0 -> transform even units.
      reverse: inference mode (subtract shift) if True.
      block_b: max batch-tile size (rows per grid step).
    Returns:
      (x_transformed [B, D], log_det_J)
    """
    B, D = x.shape
    half = D // 2
    M = params["w_in"].shape[1]
    n_mid = params["w_mid"].shape[0]

    # De-interleave (wrapper glue): view x as [B, D/2, 2] and split the pairs.
    xp = x.reshape(B, half, 2)
    even, odd = xp[:, :, 0], xp[:, :, 1]
    if mask_config:
        x1, x2 = even, odd
    else:
        x2, x1 = even, odd

    # Batch tiling: TB is a multiple of 8, capped at block_b; pad B up to it.
    TB = min(block_b, _round_up(B, 8))
    B_pad = _round_up(B, TB)
    x1_in, x2_in = x1, x2
    if B_pad != B:
        pad = ((0, B_pad - B), (0, 0))
        x1_in = jnp.pad(x1, pad)
        x2_in = jnp.pad(x2, pad)

    # Weights in bf16 (halves weight DMA + resident VMEM); biases stay f32.
    w_in = params["w_in"].astype(jnp.bfloat16)
    b_in = params["b_in"].reshape(1, -1).astype(jnp.float32)
    if n_mid > 0:
        w_mid = params["w_mid"].astype(jnp.bfloat16)
        b_mid = params["b_mid"][:, None, :].astype(jnp.float32)
    else:  # placeholder (never read in the kernel) so block shapes stay static
        w_mid = jnp.zeros((1, M, M), jnp.bfloat16)
        b_mid = jnp.zeros((1, 1, M), jnp.float32)
    w_out = params["w_out"].astype(jnp.bfloat16)
    b_out = params["b_out"].reshape(1, -1).astype(jnp.float32)
    sign = jnp.full((1,), -1.0 if reverse else 1.0, jnp.float32)

    kernel = functools.partial(_coupling_kernel, n_mid)

    row = lambda i: (i, 0)
    const2 = lambda i: (0, 0)
    const3 = lambda i: (0, 0, 0)

    flops = 2 * B_pad * (half * M + n_mid * M * M + M * half)
    bytes_accessed = (
        x1_in.size * 4 + x2_in.size * 4 + B_pad * half * 4     # x1, x2 in; x2 out
        + w_in.size * 2 + w_mid.size * 2 + w_out.size * 2
        + b_in.size * 4 + b_mid.size * 4 + b_out.size * 4)

    x2_new = pl.pallas_call(
        kernel,
        out_shape=jax.ShapeDtypeStruct((B_pad, half), x.dtype),
        grid_spec=pltpu.PrefetchScalarGridSpec(
            num_scalar_prefetch=0,
            grid=(B_pad // TB,),
            in_specs=[
                pl.BlockSpec(memory_space=pltpu.MemorySpace.SMEM),   # sign
                pl.BlockSpec((TB, half), row),                       # x1
                pl.BlockSpec((TB, half), row),                       # x2
                pl.BlockSpec((half, M), const2),                     # w_in
                pl.BlockSpec((1, M), const2),                        # b_in
                pl.BlockSpec((max(n_mid, 1), M, M), const3),         # w_mid
                pl.BlockSpec((max(n_mid, 1), 1, M), const3),         # b_mid
                pl.BlockSpec((M, half), const2),                     # w_out
                pl.BlockSpec((1, half), const2),                     # b_out
            ],
            out_specs=pl.BlockSpec((TB, half), row),
        ),
        compiler_params=pltpu.CompilerParams(
            dimension_semantics=("parallel",),
            vmem_limit_bytes=48 * 1024 * 1024,
        ),
        cost_estimate=pl.CostEstimate(
            flops=int(flops), transcendentals=0,
            bytes_accessed=int(bytes_accessed)),
    )(sign, x1_in, x2_in, w_in, b_in, w_mid, b_mid, w_out, b_out)

    x2_new = x2_new[:B]

    # Re-interleave; x1 is pure passthrough so reuse the wrapper-side slice.
    if mask_config:
        new_even, new_odd = x1, x2_new
    else:
        new_even, new_odd = x2_new, x1
    x_transformed = jnp.stack([new_even, new_odd], axis=-1).reshape(B, D)
    return x_transformed, log_det_J


def _init_params(key, in_out_dim, mid_dim, hidden):
    """Deterministic init mimicking nn.Linear default (uniform +-1/sqrt(fan_in))."""
    half = in_out_dim // 2
    n_mid = hidden - 1
    ks = jax.random.split(key, 6)

    def u(k, shape, fan_in):
        bound = 1.0 / jnp.sqrt(fan_in)
        return jax.random.uniform(k, shape, jnp.float32, -bound, bound)

    return {
        "w_in": u(ks[0], (half, mid_dim), half),
        "b_in": u(ks[1], (mid_dim,), half),
        "w_mid": u(ks[2], (n_mid, mid_dim, mid_dim), mid_dim),
        "b_mid": u(ks[3], (n_mid, mid_dim), mid_dim),
        "w_out": u(ks[4], (mid_dim, half), mid_dim),
        "b_out": u(ks[5], (half,), mid_dim),
    }


def _reference_forward(x, log_det_J, params, mask_config, reverse=False):
    """Pure-JAX reference mirroring the kernel's bf16 matmul / f32 accumulate."""
    even, odd = x[:, ::2], x[:, 1::2]
    if mask_config:
        x1, x2 = even, odd
    else:
        x2, x1 = even, odd

    def mm(a, w):
        return jnp.dot(a.astype(jnp.bfloat16), w.astype(jnp.bfloat16),
                       preferred_element_type=jnp.float32)

    h = jnp.maximum(mm(x1, params["w_in"]) + params["b_in"], 0.0)
    for i in range(params["w_mid"].shape[0]):
        h = jnp.maximum(mm(h, params["w_mid"][i]) + params["b_mid"][i], 0.0)
    shift = mm(h, params["w_out"]) + params["b_out"]
    x2 = x2 - shift if reverse else x2 + shift
    if mask_config:
        new_even, new_odd = x1, x2
    else:
        new_even, new_odd = x2, x1
    out = jnp.stack([new_even, new_odd], axis=-1).reshape(x.shape)
    return out, log_det_J


if __name__ == "__main__":
    # MXU/VPU-friendly sizes: D/2 = 128 lanes, M = 128.
    in_out_dim = 256
    mid_dim = 128
    hidden = 3            # -> 2 mid layers
    mask_config = 1

    key = jax.random.PRNGKey(0)
    k_x, k_p, k_x2 = jax.random.split(key, 3)
    params = _init_params(k_p, in_out_dim, mid_dim, hidden)
    log_det_J = jnp.float32(0.0)

    # --- test 1: single-tile batch ---
    B = 8
    x = jax.random.normal(k_x, (B, in_out_dim), jnp.float32)
    out, ldj = additive_coupling_forward(x, log_det_J, params, mask_config,
                                         reverse=False)
    out = jax.block_until_ready(out)
    ref, _ = _reference_forward(x, log_det_J, params, mask_config, reverse=False)
    assert jnp.allclose(out, ref, atol=1e-3, rtol=1e-3), "mismatch vs reference"

    # Round-trip sanity: reverse=True inverts the coupling exactly (shared shift).
    inv, _ = additive_coupling_forward(out, ldj, params, mask_config,
                                       reverse=True)
    inv = jax.block_until_ready(inv)
    assert jnp.allclose(inv, x, atol=1e-4, rtol=1e-4), "reverse mismatch"

    # --- test 2: ragged batch exercising padding + multi-step grid ---
    B2 = 13
    x2 = jax.random.normal(k_x2, (B2, in_out_dim), jnp.float32)
    out2, _ = additive_coupling_forward(x2, log_det_J, params, mask_config,
                                        reverse=False, block_b=8)
    out2 = jax.block_until_ready(out2)
    ref2, _ = _reference_forward(x2, log_det_J, params, mask_config,
                                 reverse=False)
    assert jnp.allclose(out2, ref2, atol=1e-3, rtol=1e-3), "ragged-batch mismatch"

    print("KERNEL_OK")
</pallas_src>

<mosaic_0001>
module attributes {stable_mosaic.version = 11 : i64} {
  func.func @_coupling_kernel(%arg0: i32, %arg1: memref<1xf32, #tpu.memory_space<smem>>, %arg2: memref<8x128xf32, #tpu.memory_space<vmem>>, %arg3: memref<8x128xf32, #tpu.memory_space<vmem>>, %arg4: memref<128x128xbf16, #tpu.memory_space<vmem>>, %arg5: memref<1x128xf32, #tpu.memory_space<vmem>>, %arg6: memref<2x128x128xbf16, #tpu.memory_space<vmem>>, %arg7: memref<2x1x128xf32, #tpu.memory_space<vmem>>, %arg8: memref<128x128xbf16, #tpu.memory_space<vmem>>, %arg9: memref<1x128xf32, #tpu.memory_space<vmem>>, %arg10: memref<8x128xf32, #tpu.memory_space<vmem>>) attributes {dimension_semantics = [#tpu.dimension_semantics<parallel>], iteration_bounds = array<i64: 1>, scalar_prefetch = 0 : i64, scratch_operands = 0 : i64, tpu.core_type = #tpu.core_type<tc>, window_params = [{transform_indices = @transform_0, window_bounds = array<i64: 1>}, {transform_indices = @transform_1, window_bounds = array<i64: 8, 128>}, {transform_indices = @transform_2, window_bounds = array<i64: 8, 128>}, {pipeline_mode = #tpu.pipeline_mode<synchronous>, transform_indices = @transform_3, window_bounds = array<i64: 128, 128>}, {pipeline_mode = #tpu.pipeline_mode<synchronous>, transform_indices = @transform_4, window_bounds = array<i64: 1, 128>}, {pipeline_mode = #tpu.pipeline_mode<synchronous>, transform_indices = @transform_5, window_bounds = array<i64: 2, 128, 128>}, {pipeline_mode = #tpu.pipeline_mode<synchronous>, transform_indices = @transform_6, window_bounds = array<i64: 2, 1, 128>}, {pipeline_mode = #tpu.pipeline_mode<synchronous>, transform_indices = @transform_7, window_bounds = array<i64: 128, 128>}, {pipeline_mode = #tpu.pipeline_mode<synchronous>, transform_indices = @transform_8, window_bounds = array<i64: 1, 128>}, {transform_indices = @transform_9, window_bounds = array<i64: 8, 128>}]} {
    %c0 = arith.constant 0 : index
    %c0_0 = arith.constant 0 : index
    %0 = vector.load %arg2[%c0, %c0_0] : memref<8x128xf32, #tpu.memory_space<vmem>>, vector<8x128xf32>
    %1 = arith.truncf %0 : vector<8x128xf32> to vector<8x128xbf16>
    %c0_1 = arith.constant 0 : index
    %c0_2 = arith.constant 0 : index
    %2 = vector.load %arg4[%c0_1, %c0_2] : memref<128x128xbf16, #tpu.memory_space<vmem>>, vector<128x128xbf16>
    %cst = arith.constant dense<0.000000e+00> : vector<8x128xf32>
    %3 = tpu.matmul %1, %2, %cst {dimension_numbers = #tpu.dot_dimension_numbers<[1], [0], [0], [1], [0, 0, 1, 1], [], []>} : vector<8x128xbf16>, vector<128x128xbf16>, vector<8x128xf32> -> vector<8x128xf32>
    %c0_3 = arith.constant 0 : index
    %c0_4 = arith.constant 0 : index
    %4 = vector.load %arg5[%c0_3, %c0_4] : memref<1x128xf32, #tpu.memory_space<vmem>>, vector<1x128xf32>
    %5 = vector.broadcast %4 : vector<1x128xf32> to vector<8x128xf32>
    %6 = arith.addf %3, %5 : vector<8x128xf32>
    %cst_5 = arith.constant 0.000000e+00 : f32
    %7 = vector.broadcast %cst_5 : f32 to vector<8x128xf32>
    %8 = arith.maximumf %6, %7 : vector<8x128xf32>
    %9 = arith.truncf %8 : vector<8x128xf32> to vector<8x128xbf16>
    %c0_6 = arith.constant 0 : index
    %c0_7 = arith.constant 0 : index
    %c0_8 = arith.constant 0 : index
    %10 = vector.load %arg6[%c0_6, %c0_7, %c0_8] : memref<2x128x128xbf16, #tpu.memory_space<vmem>>, vector<1x128x128xbf16>
    %11 = vector.shape_cast %10 : vector<1x128x128xbf16> to vector<128x128xbf16>
    %cst_9 = arith.constant dense<0.000000e+00> : vector<8x128xf32>
    %12 = tpu.matmul %9, %11, %cst_9 {dimension_numbers = #tpu.dot_dimension_numbers<[1], [0], [0], [1], [0, 0, 1, 1], [], []>} : vector<8x128xbf16>, vector<128x128xbf16>, vector<8x128xf32> -> vector<8x128xf32>
    %c0_10 = arith.constant 0 : index
    %c0_11 = arith.constant 0 : index
    %c0_12 = arith.constant 0 : index
    %13 = vector.load %arg7[%c0_10, %c0_11, %c0_12] : memref<2x1x128xf32, #tpu.memory_space<vmem>>, vector<1x1x128xf32>
    %14 = vector.shape_cast %13 : vector<1x1x128xf32> to vector<1x128xf32>
    %15 = vector.broadcast %14 : vector<1x128xf32> to vector<8x128xf32>
    %16 = arith.addf %12, %15 : vector<8x128xf32>
    %cst_13 = arith.constant 0.000000e+00 : f32
    %17 = vector.broadcast %cst_13 : f32 to vector<8x128xf32>
    %18 = arith.maximumf %16, %17 : vector<8x128xf32>
    %19 = arith.truncf %18 : vector<8x128xf32> to vector<8x128xbf16>
    %c1 = arith.constant 1 : index
    %c0_14 = arith.constant 0 : index
    %c0_15 = arith.constant 0 : index
    %20 = vector.load %arg6[%c1, %c0_14, %c0_15] : memref<2x128x128xbf16, #tpu.memory_space<vmem>>, vector<1x128x128xbf16>
    %21 = vector.shape_cast %20 : vector<1x128x128xbf16> to vector<128x128xbf16>
    %cst_16 = arith.constant dense<0.000000e+00> : vector<8x128xf32>
    %22 = tpu.matmul %19, %21, %cst_16 {dimension_numbers = #tpu.dot_dimension_numbers<[1], [0], [0], [1], [0, 0, 1, 1], [], []>} : vector<8x128xbf16>, vector<128x128xbf16>, vector<8x128xf32> -> vector<8x128xf32>
    %c1_17 = arith.constant 1 : index
    %c0_18 = arith.constant 0 : index
    %c0_19 = arith.constant 0 : index
    %23 = vector.load %arg7[%c1_17, %c0_18, %c0_19] : memref<2x1x128xf32, #tpu.memory_space<vmem>>, vector<1x1x128xf32>
    %24 = vector.shape_cast %23 : vector<1x1x128xf32> to vector<1x128xf32>
    %25 = vector.broadcast %24 : vector<1x128xf32> to vector<8x128xf32>
    %26 = arith.addf %22, %25 : vector<8x128xf32>
    %cst_20 = arith.constant 0.000000e+00 : f32
    %27 = vector.broadcast %cst_20 : f32 to vector<8x128xf32>
    %28 = arith.maximumf %26, %27 : vector<8x128xf32>
    %29 = arith.truncf %28 : vector<8x128xf32> to vector<8x128xbf16>
    %c0_21 = arith.constant 0 : index
    %c0_22 = arith.constant 0 : index
    %30 = vector.load %arg8[%c0_21, %c0_22] : memref<128x128xbf16, #tpu.memory_space<vmem>>, vector<128x128xbf16>
    %cst_23 = arith.constant dense<0.000000e+00> : vector<8x128xf32>
    %31 = tpu.matmul %29, %30, %cst_23 {dimension_numbers = #tpu.dot_dimension_numbers<[1], [0], [0], [1], [0, 0, 1, 1], [], []>} : vector<8x128xbf16>, vector<128x128xbf16>, vector<8x128xf32> -> vector<8x128xf32>
    %c0_24 = arith.constant 0 : index
    %c0_25 = arith.constant 0 : index
    %32 = vector.load %arg9[%c0_24, %c0_25] : memref<1x128xf32, #tpu.memory_space<vmem>>, vector<1x128xf32>
    %33 = vector.broadcast %32 : vector<1x128xf32> to vector<8x128xf32>
    %34 = arith.addf %31, %33 : vector<8x128xf32>
    %c0_26 = arith.constant 0 : index
    %35 = memref.load %arg1[%c0_26] : memref<1xf32, #tpu.memory_space<smem>>
    %c0_27 = arith.constant 0 : index
    %c0_28 = arith.constant 0 : index
    %36 = vector.load %arg3[%c0_27, %c0_28] : memref<8x128xf32, #tpu.memory_space<vmem>>, vector<8x128xf32>
    %37 = vector.broadcast %35 : f32 to vector<8x128xf32>
    %38 = arith.mulf %37, %34 : vector<8x128xf32>
    %39 = arith.addf %36, %38 : vector<8x128xf32>
    %c0_29 = arith.constant 0 : index
    %c0_30 = arith.constant 0 : index
    %40 = vector.load %arg10[%c0_29, %c0_30] : memref<8x128xf32, #tpu.memory_space<vmem>>, vector<8x128xf32>
    tpu.vector_store %arg10[%c0_29, %c0_30], %39 {strides = array<i32>} : memref<8x128xf32, #tpu.memory_space<vmem>>, vector<8x128xf32>,
    return
  }
  func.func @transform_0(%arg0: i32) -> i32 {
    %c0_i32 = arith.constant 0 : i32
    %c0_i32_0 = arith.constant 0 : i32
    return %c0_i32 : i32
  }
  func.func @transform_1(%arg0: i32) -> (i32, i32) {
    %c0_i32 = arith.constant 0 : i32
    %c0_i32_0 = arith.constant 0 : i32
    return %arg0, %c0_i32 : i32, i32
  }
  func.func @transform_2(%arg0: i32) -> (i32, i32) {
    %c0_i32 = arith.constant 0 : i32
    %c0_i32_0 = arith.constant 0 : i32
    return %arg0, %c0_i32 : i32, i32
  }
  func.func @transform_3(%arg0: i32) -> (i32, i32) {
    %c0_i32 = arith.constant 0 : i32
    %c0_i32_0 = arith.constant 0 : i32
    %c0_i32_1 = arith.constant 0 : i32
    return %c0_i32, %c0_i32_0 : i32, i32
  }
  func.func @transform_4(%arg0: i32) -> (i32, i32) {
    %c0_i32 = arith.constant 0 : i32
    %c0_i32_0 = arith.constant 0 : i32
    %c0_i32_1 = arith.constant 0 : i32
    return %c0_i32, %c0_i32_0 : i32, i32
  }
  func.func @transform_5(%arg0: i32) -> (i32, i32, i32) {
    %c0_i32 = arith.constant 0 : i32
    %c0_i32_0 = arith.constant 0 : i32
    %c0_i32_1 = arith.constant 0 : i32
    %c0_i32_2 = arith.constant 0 : i32
    return %c0_i32, %c0_i32_0, %c0_i32_1 : i32, i32, i32
  }
  func.func @transform_6(%arg0: i32) -> (i32, i32, i32) {
    %c0_i32 = arith.constant 0 : i32
    %c0_i32_0 = arith.constant 0 : i32
    %c0_i32_1 = arith.constant 0 : i32
    %c0_i32_2 = arith.constant 0 : i32
    return %c0_i32, %c0_i32_0, %c0_i32_1 : i32, i32, i32
  }
  func.func @transform_7(%arg0: i32) -> (i32, i32) {
    %c0_i32 = arith.constant 0 : i32
    %c0_i32_0 = arith.constant 0 : i32
    %c0_i32_1 = arith.constant 0 : i32
    return %c0_i32, %c0_i32_0 : i32, i32
  }
  func.func @transform_8(%arg0: i32) -> (i32, i32) {
    %c0_i32 = arith.constant 0 : i32
    %c0_i32_0 = arith.constant 0 : i32
    %c0_i32_1 = arith.constant 0 : i32
    return %c0_i32, %c0_i32_0 : i32, i32
  }
  func.func @transform_9(%arg0: i32) -> (i32, i32) {
    %c0_i32 = arith.constant 0 : i32
    %c0_i32_0 = arith.constant 0 : i32
    return %arg0, %c0_i32 : i32, i32
  }
}

</mosaic_0001>

<llo_original>
// kernel: tpu_custom_call.1
$region0: #{tpu_custom_call.1}
  #allocation0 [shape = 'u32[]', space=smem, size = 0x4, offset = 0x4, fixed_abs, tag = 'smem constant byte address 0x4 - core index']
  #allocation1 [shape = 'u32[72,128]{1,0:T(1,128)}', space=vmem, size = 0x9000, scoped, tag = 'internal scratch']
  #allocation2 [shape = 'f32[1]{0:T(128)S(6)}', space=smem, size = 0x200, scoped, tag = 'scoped memory for tpu_custom_call.1']
  %s0 = inlined_call_operand.<no memory space> [shape: f32[1], index: 0, kind: input, shape index: {}]
  %s1 = inlined_call_operand.hbm [shape: f32[8,128], index: 1, kind: input, shape index: {}]
  %s2 = inlined_call_operand.hbm [shape: f32[8,128], index: 2, kind: input, shape index: {}]
  %s3 = inlined_call_operand.hbm [shape: bf16[128,128], index: 3, kind: input, shape index: {}]
  %s4 = inlined_call_operand.vmem [shape: f32[1,128], index: 4, kind: input, shape index: {}]
  %s5 = inlined_call_operand.hbm [shape: bf16[2,128,128], index: 5, kind: input, shape index: {}]
  %s6 = inlined_call_operand.vmem [shape: f32[2,1,128], index: 6, kind: input, shape index: {}]
  %s7 = inlined_call_operand.hbm [shape: bf16[128,128], index: 7, kind: input, shape index: {}]
  %s8 = inlined_call_operand.vmem [shape: f32[1,128], index: 8, kind: input, shape index: {}]
  %s9 = inlined_call_operand.hbm [shape: f32[8,128], index: 9, kind: output, shape index: {}]
  %s10 = sld [smem:[#allocation0]]
  $region66: #{tpu_custom_call.1} parent=0
    _
  %s12 = ssub.s32 1, %s10
  %s13 = scalar_select 0, %s12, %s10
  %14 = sst [smem:[#allocation2]] %s0
  $region1: #{tpu_custom_call.1} parent=0
    #allocation3 [shape = 'u8[4096]{0}', space=vmem, size = 0x1000, scoped, tag = 'input window, operand 1, single buffered']
    #allocation4 [shape = 's32[1]{0}', space=sflag, size = 0x4, scoped, tag = 'scoped memory for tpu_custom_call.1']
    #allocation5 [shape = 's32[1]{0}', space=sflag, size = 0x4, scoped, tag = 'scoped memory for tpu_custom_call.1']
    #allocation6 [shape = 'u8[4096]{0}', space=vmem, size = 0x1000, scoped, tag = 'input window, operand 2, single buffered']
    #allocation7 [shape = 's32[1]{0}', space=sflag, size = 0x4, scoped, tag = 'scoped memory for tpu_custom_call.1']
    #allocation8 [shape = 'u8[32768]{0}', space=vmem, size = 0x8000, scoped, tag = 'input window, operand 3, single buffered']
    #allocation9 [shape = 'u8[65536]{0}', space=vmem, size = 0x10000, scoped, tag = 'input window, operand 5, single buffered']
    #allocation10 [shape = 's32[1]{0}', space=sflag, size = 0x4, scoped, tag = 'scoped memory for tpu_custom_call.1']
    #allocation11 [shape = 'u8[32768]{0}', space=vmem, size = 0x8000, scoped, tag = 'input window, operand 7, single buffered']
    #allocation12 [shape = 'u8[4096]{0}', space=vmem, size = 0x1000, scoped, tag = 'output window, operand 0, single buffered']
    %15 = vsyncpa [#allocation4], 0
    %16 = vsyncpa [#allocation7], 0
    %17 = vsyncpa [#allocation10], 0
    %18 = vsyncpa [#allocation5], 0
    // Predicated region
    $region2: #{tpu_custom_call.1} parent=1 // pred_check
      _
    $region3: #{tpu_custom_call.1} parent=1 // pred_check_branch
      %20 = sbr.rel (0) target = $region5
    $region4: #{tpu_custom_call.1} parent=1 // pred_region
      _
    $region5: #{tpu_custom_call.1} parent=1 // pred_fallthru
      _
    // Predicated region
    $region6: #{tpu_custom_call.1} parent=1 // pred_check
      _
    $region7: #{tpu_custom_call.1} parent=1 // pred_check_branch
      %22 = sbr.rel (0) target = $region9
    $region8: #{tpu_custom_call.1} parent=1 // pred_region
      %24 = vsyncadd [#allocation4], 0
      %s26 = sshll.u32 %s1, 4
      %s27 = int_to_ptr.hbm [resolvable:$true] %s26
      %s28 = sshll.u32 [#allocation3], 4
      %s29 = int_to_ptr.vmem [resolvable:$true] %s28
      %31 = dma.hbm_to_vmem [thread:$0]  %s27, 128, %s29, [#allocation4]
    $region9: #{tpu_custom_call.1} parent=1 // pred_fallthru
      _
    // Predicated region
    $region10: #{tpu_custom_call.1} parent=1 // pred_check
      _
    $region11: #{tpu_custom_call.1} parent=1 // pred_check_branch
      %33 = sbr.rel (0) target = $region13
    $region12: #{tpu_custom_call.1} parent=1 // pred_region
      %35 = vsyncadd [#allocation7], 0
      %s37 = sshll.u32 %s2, 4
      %s38 = int_to_ptr.hbm [resolvable:$true] %s37
      %s39 = sshll.u32 [#allocation6], 4
      %s40 = int_to_ptr.vmem [resolvable:$true] %s39
      %42 = dma.hbm_to_vmem [thread:$0]  %s38, 128, %s40, [#allocation7]
    $region13: #{tpu_custom_call.1} parent=1 // pred_fallthru
      _
    // Predicated region
    $region14: #{tpu_custom_call.1} parent=1 // pred_check
      _
    $region15: #{tpu_custom_call.1} parent=1 // pred_check_branch
      %44 = sbr.rel (0) target = $region17
    $region16: #{tpu_custom_call.1} parent=1 // pred_region
      %46 = vsyncadd [#allocation7], 0
      %s47 = sshll.u32 %s3, 4
      %s48 = int_to_ptr.hbm [resolvable:$true] %s47
      %s49 = sshll.u32 [#allocation8], 4
      %s50 = int_to_ptr.vmem [resolvable:$true] %s49
      %55 = dma.hbm_to_vmem [thread:$0]  %s48, 1024, %s50, [#allocation7], 64, 64, 4
    $region17: #{tpu_custom_call.1} parent=1 // pred_fallthru
      _
    // Predicated region
    $region18: #{tpu_custom_call.1} parent=1 // pred_check
      _
    $region19: #{tpu_custom_call.1} parent=1 // pred_check_branch
      %57 = sbr.rel (0) target = $region21
    $region20: #{tpu_custom_call.1} parent=1 // pred_region
      _
    $region21: #{tpu_custom_call.1} parent=1 // pred_fallthru
      _
    // Predicated region
    $region22: #{tpu_custom_call.1} parent=1 // pred_check
      _
    $region23: #{tpu_custom_call.1} parent=1 // pred_check_branch
      %59 = sbr.rel (0) target = $region25
    $region24: #{tpu_custom_call.1} parent=1 // pred_region
      %61 = vsyncadd [#allocation10], 0
      %s62 = sshll.u32 %s5, 4
      %s63 = int_to_ptr.hbm [resolvable:$true] %s62
      %s64 = sshll.u32 [#allocation9], 4
      %s65 = int_to_ptr.vmem [resolvable:$true] %s64
      %70 = dma.hbm_to_vmem [thread:$0]  %s63, 2048, %s65, [#allocation10], 64, 64, 4
    $region25: #{tpu_custom_call.1} parent=1 // pred_fallthru
      _
    // Predicated region
    $region26: #{tpu_custom_call.1} parent=1 // pred_check
      _
    $region27: #{tpu_custom_call.1} parent=1 // pred_check_branch
      %72 = sbr.rel (0) target = $region29
    $region28: #{tpu_custom_call.1} parent=1 // pred_region
      _
    $region29: #{tpu_custom_call.1} parent=1 // pred_fallthru
      _
    // Predicated region
    $region30: #{tpu_custom_call.1} parent=1 // pred_check
      _
    $region31: #{tpu_custom_call.1} parent=1 // pred_check_branch
      %74 = sbr.rel (0) target = $region33
    $region32: #{tpu_custom_call.1} parent=1 // pred_region
      %76 = vsyncadd [#allocation10], 0
      %s77 = sshll.u32 %s7, 4
      %s78 = int_to_ptr.hbm [resolvable:$true] %s77
      %s79 = sshll.u32 [#allocation11], 4
      %s80 = int_to_ptr.vmem [resolvable:$true] %s79
      %85 = dma.hbm_to_vmem [thread:$0]  %s78, 1024, %s80, [#allocation10], 64, 64, 4
    $region33: #{tpu_custom_call.1} parent=1 // pred_fallthru
      _
    // Predicated region
    $region34: #{tpu_custom_call.1} parent=1 // pred_check
      _
    $region35: #{tpu_custom_call.1} parent=1 // pred_check_branch
      %87 = sbr.rel (0) target = $region37
    $region36: #{tpu_custom_call.1} parent=1 // pred_region
      _
    $region37: #{tpu_custom_call.1} parent=1 // pred_fallthru
      _
    // Predicated region
    $region38: #{tpu_custom_call.1} parent=1 // pred_check
      _
    $region39: #{tpu_custom_call.1} parent=1 // pred_check_branch
      %89 = sbr.rel (0) target = $region41
    $region40: #{tpu_custom_call.1} parent=1 // pred_region
      %91 = dma.done [#allocation4], 128
    $region41: #{tpu_custom_call.1} parent=1 // pred_fallthru
      _
    // Predicated region
    $region42: #{tpu_custom_call.1} parent=1 // pred_check
      _
    $region43: #{tpu_custom_call.1} parent=1 // pred_check_branch
      %93 = sbr.rel (0) target = $region45
    $region44: #{tpu_custom_call.1} parent=1 // pred_region
      %95 = dma.done [#allocation7], 128
    $region45: #{tpu_custom_call.1} parent=1 // pred_fallthru
      _
    // Predicated region
    $region46: #{tpu_custom_call.1} parent=1 // pred_check
      _
    $region47: #{tpu_custom_call.1} parent=1 // pred_check_branch
      %97 = sbr.rel (0) target = $region49
    $region48: #{tpu_custom_call.1} parent=1 // pred_region
      %99 = dma.done [#allocation7], 1024
    $region49: #{tpu_custom_call.1} parent=1 // pred_fallthru
      _
    // Predicated region
    $region50: #{tpu_custom_call.1} parent=1 // pred_check
      _
    $region51: #{tpu_custom_call.1} parent=1 // pred_check_branch
      %101 = sbr.rel (0) target = $region53
    $region52: #{tpu_custom_call.1} parent=1 // pred_region
      %103 = dma.done [#allocation10], 2048
    $region53: #{tpu_custom_call.1} parent=1 // pred_fallthru
      _
    // Predicated region
    $region54: #{tpu_custom_call.1} parent=1 // pred_check
      _
    $region55: #{tpu_custom_call.1} parent=1 // pred_check_branch
      %105 = sbr.rel (0) target = $region57
    $region56: #{tpu_custom_call.1} parent=1 // pred_region
      %107 = dma.done [#allocation10], 1024
    $region57: #{tpu_custom_call.1} parent=1 // pred_fallthru
      _
    %v108 = vld [vmem:[#allocation3] sm:$0xff]
    %v109 = vpack.c.bf16 %v108, %v108
    %v110 = vld [vmem:[#allocation8] sm:$0xf]
    %v111 = vld [vmem:[#allocation8 + $0x4] sm:$0xf]
    %v112 = vld [vmem:[#allocation8 + $0x8] sm:$0xf]
    %v113 = vld [vmem:[#allocation8 + $0xc] sm:$0xf]
    %v114 = vld [vmem:[#allocation8 + $0x10] sm:$0xf]
    %v115 = vld [vmem:[#allocation8 + $0x14] sm:$0xf]
    %v116 = vld [vmem:[#allocation8 + $0x18] sm:$0xf]
    %v117 = vld [vmem:[#allocation8 + $0x1c] sm:$0xf]
    %v118 = vld [vmem:[#allocation8 + $0x20] sm:$0xf]
    %v119 = vld [vmem:[#allocation8 + $0x24] sm:$0xf]
    %v120 = vld [vmem:[#allocation8 + $0x28] sm:$0xf]
    %v121 = vld [vmem:[#allocation8 + $0x2c] sm:$0xf]
    %v122 = vld [vmem:[#allocation8 + $0x30] sm:$0xf]
    %v123 = vld [vmem:[#allocation8 + $0x34] sm:$0xf]
    %v124 = vld [vmem:[#allocation8 + $0x38] sm:$0xf]
    %v125 = vld [vmem:[#allocation8 + $0x3c] sm:$0xf]
    %v126 = vld [vmem:[%s4] sm:$0x1]
    %v128 = vperm.slane %v126, 0
    %v146 = vunpack.c.l.b16 %v110
    %v147 = vunpack.c.l.b16 %v111
    %v148 = vunpack.c.l.b16 %v112
    %v149 = vunpack.c.l.b16 %v113
    %v150 = vunpack.c.l.b16 %v114
    %v151 = vunpack.c.l.b16 %v115
    %v152 = vunpack.c.l.b16 %v116
    %v153 = vunpack.c.l.b16 %v117
    %v154 = vunpack.c.l.b16 %v118
    %v155 = vunpack.c.l.b16 %v119
    %v156 = vunpack.c.l.b16 %v120
    %v157 = vunpack.c.l.b16 %v121
    %v158 = vunpack.c.l.b16 %v122
    %v159 = vunpack.c.l.b16 %v123
    %v160 = vunpack.c.l.b16 %v124
    %v161 = vunpack.c.l.b16 %v125
    %v162 = vpack.c.b16 %v147, %v146
    %v163 = vpack.c.b16 %v149, %v148
    %v164 = vpack.c.b16 %v151, %v150
    %v165 = vpack.c.b16 %v153, %v152
    %v166 = vpack.c.b16 %v155, %v154
    %v167 = vpack.c.b16 %v157, %v156
    %v168 = vpack.c.b16 %v159, %v158
    %v169 = vpack.c.b16 %v161, %v160
    %178 = vmatpush.bf16.msra.mxu0 %v169
    %179 = vmatpush.bf16.msra.mxu0 %v168
    %180 = vmatpush.bf16.msra.mxu0 %v167
    %181 = vmatpush.bf16.msra.mxu0 %v166
    %182 = vmatpush.bf16.msra.mxu0 %v165
    %183 = vmatpush.bf16.msra.mxu0 %v164
    %184 = vmatpush.bf16.msra.mxu0 %v163
    %185 = vmatpush.bf16.msra.mxu0 %v162
    %186 = vmatmul.bf16.gmra.mxu0 %v109
    %v187 = vpop.f32.mrf.mxu0
    %v188 = vadd.f32 %v128, %v187
    %v189 = vpop.f32.mrf.mxu0
    %190 = vdwg.mxu0
    %v191 = vmax.f32 %v188, 0.0
    %v192 = vpack.c.bf16 %v191, %v191
    %v193 = vld [vmem:[#allocation9] sm:$0xf]
    %v194 = vld [vmem:[#allocation9 + $0x4] sm:$0xf]
    %v195 = vld [vmem:[#allocation9 + $0x8] sm:$0xf]
    %v196 = vld [vmem:[#allocation9 + $0xc] sm:$0xf]
    %v197 = vld [vmem:[#allocation9 + $0x10] sm:$0xf]
    %v198 = vld [vmem:[#allocation9 + $0x14] sm:$0xf]
    %v199 = vld [vmem:[#allocation9 + $0x18] sm:$0xf]
    %v200 = vld [vmem:[#allocation9 + $0x1c] sm:$0xf]
    %v201 = vld [vmem:[#allocation9 + $0x20] sm:$0xf]
    %v202 = vld [vmem:[#allocation9 + $0x24] sm:$0xf]
    %v203 = vld [vmem:[#allocation9 + $0x28] sm:$0xf]
    %v204 = vld [vmem:[#allocation9 + $0x2c] sm:$0xf]
    %v205 = vld [vmem:[#allocation9 + $0x30] sm:$0xf]
    %v206 = vld [vmem:[#allocation9 + $0x34] sm:$0xf]
    %v207 = vld [vmem:[#allocation9 + $0x38] sm:$0xf]
    %v208 = vld [vmem:[#allocation9 + $0x3c] sm:$0xf]
    %v209 = vld [vmem:[%s6] sm:$0x1]
    %v211 = vperm.slane %v209, 0
    %v229 = vunpack.c.l.b16 %v193
    %v230 = vunpack.c.l.b16 %v194
    %v231 = vunpack.c.l.b16 %v195
    %v232 = vunpack.c.l.b16 %v196
    %v233 = vunpack.c.l.b16 %v197
    %v234 = vunpack.c.l.b16 %v198
    %v235 = vunpack.c.l.b16 %v199
    %v236 = vunpack.c.l.b16 %v200
    %v237 = vunpack.c.l.b16 %v201
    %v238 = vunpack.c.l.b16 %v202
    %v239 = vunpack.c.l.b16 %v203
    %v240 = vunpack.c.l.b16 %v204
    %v241 = vunpack.c.l.b16 %v205
    %v242 = vunpack.c.l.b16 %v206
    %v243 = vunpack.c.l.b16 %v207
    %v244 = vunpack.c.l.b16 %v208
    %v245 = vpack.c.b16 %v230, %v229
    %v246 = vpack.c.b16 %v232, %v231
    %v247 = vpack.c.b16 %v234, %v233
    %v248 = vpack.c.b16 %v236, %v235
    %v249 = vpack.c.b16 %v238, %v237
    %v250 = vpack.c.b16 %v240, %v239
    %v251 = vpack.c.b16 %v242, %v241
    %v252 = vpack.c.b16 %v244, %v243
    %261 = vmatpush.bf16.msra.mxu0 %v252
    %262 = vmatpush.bf16.msra.mxu0 %v251
    %263 = vmatpush.bf16.msra.mxu0 %v250
    %264 = vmatpush.bf16.msra.mxu0 %v249
    %265 = vmatpush.bf16.msra.mxu0 %v248
    %266 = vmatpush.bf16.msra.mxu0 %v247
    %267 = vmatpush.bf16.msra.mxu0 %v246
    %268 = vmatpush.bf16.msra.mxu0 %v245
    %269 = vmatmul.bf16.gmra.mxu0 %v192
    %v270 = vpop.f32.mrf.mxu0
    %v271 = vadd.f32 %v211, %v270
    %v272 = vpop.f32.mrf.mxu0
    %273 = vdwg.mxu0
    %v274 = vmax.f32 %v271, 0.0
    %v275 = vpack.c.bf16 %v274, %v274
    %s276 = scalar_lea.vmem [#allocation9], 64
    %v277 = vld [vmem:[%s276] sm:$0xf]
    %v278 = vld [vmem:[%s276 + $0x4] sm:$0xf]
    %v279 = vld [vmem:[%s276 + $0x8] sm:$0xf]
    %v280 = vld [vmem:[%s276 + $0xc] sm:$0xf]
    %v281 = vld [vmem:[%s276 + $0x10] sm:$0xf]
    %v282 = vld [vmem:[%s276 + $0x14] sm:$0xf]
    %v283 = vld [vmem:[%s276 + $0x18] sm:$0xf]
    %v284 = vld [vmem:[%s276 + $0x1c] sm:$0xf]
    %v285 = vld [vmem:[%s276 + $0x20] sm:$0xf]
    %v286 = vld [vmem:[%s276 + $0x24] sm:$0xf]
    %v287 = vld [vmem:[%s276 + $0x28] sm:$0xf]
    %v288 = vld [vmem:[%s276 + $0x2c] sm:$0xf]
    %v289 = vld [vmem:[%s276 + $0x30] sm:$0xf]
    %v290 = vld [vmem:[%s276 + $0x34] sm:$0xf]
    %v291 = vld [vmem:[%s276 + $0x38] sm:$0xf]
    %v292 = vld [vmem:[%s276 + $0x3c] sm:$0xf]
    %s293 = scalar_lea.vmem %s6, 1
    %v294 = vld [vmem:[%s293] sm:$0x1]
    %v296 = vperm.slane %v294, 0
    %v314 = vunpack.c.l.b16 %v277
    %v315 = vunpack.c.l.b16 %v278
    %v316 = vunpack.c.l.b16 %v279
    %v317 = vunpack.c.l.b16 %v280
    %v318 = vunpack.c.l.b16 %v281
    %v319 = vunpack.c.l.b16 %v282
    %v320 = vunpack.c.l.b16 %v283
    %v321 = vunpack.c.l.b16 %v284
    %v322 = vunpack.c.l.b16 %v285
    %v323 = vunpack.c.l.b16 %v286
    %v324 = vunpack.c.l.b16 %v287
    %v325 = vunpack.c.l.b16 %v288
    %v326 = vunpack.c.l.b16 %v289
    %v327 = vunpack.c.l.b16 %v290
    %v328 = vunpack.c.l.b16 %v291
    %v329 = vunpack.c.l.b16 %v292
    %v330 = vpack.c.b16 %v315, %v314
    %v331 = vpack.c.b16 %v317, %v316
    %v332 = vpack.c.b16 %v319, %v318
    %v333 = vpack.c.b16 %v321, %v320
    %v334 = vpack.c.b16 %v323, %v322
    %v335 = vpack.c.b16 %v325, %v324
    %v336 = vpack.c.b16 %v327, %v326
    %v337 = vpack.c.b16 %v329, %v328
    %346 = vmatpush.bf16.msra.mxu0 %v337
    %347 = vmatpush.bf16.msra.mxu0 %v336
    %348 = vmatpush.bf16.msra.mxu0 %v335
    %349 = vmatpush.bf16.msra.mxu0 %v334
    %350 = vmatpush.bf16.msra.mxu0 %v333
    %351 = vmatpush.bf16.msra.mxu0 %v332
    %352 = vmatpush.bf16.msra.mxu0 %v331
    %353 = vmatpush.bf16.msra.mxu0 %v330
    %354 = vmatmul.bf16.gmra.mxu0 %v275
    %v355 = vpop.f32.mrf.mxu0
    %v356 = vadd.f32 %v296, %v355
    %v357 = vpop.f32.mrf.mxu0
    %358 = vdwg.mxu0
    %v359 = vmax.f32 %v356, 0.0
    %v360 = vpack.c.bf16 %v359, %v359
    %v361 = vld [vmem:[#allocation11] sm:$0xf]
    %v362 = vld [vmem:[#allocation11 + $0x4] sm:$0xf]
    %v363 = vld [vmem:[#allocation11 + $0x8] sm:$0xf]
    %v364 = vld [vmem:[#allocation11 + $0xc] sm:$0xf]
    %v365 = vld [vmem:[#allocation11 + $0x10] sm:$0xf]
    %v366 = vld [vmem:[#allocation11 + $0x14] sm:$0xf]
    %v367 = vld [vmem:[#allocation11 + $0x18] sm:$0xf]
    %v368 = vld [vmem:[#allocation11 + $0x1c] sm:$0xf]
    %v369 = vld [vmem:[#allocation11 + $0x20] sm:$0xf]
    %v370 = vld [vmem:[#allocation11 + $0x24] sm:$0xf]
    %v371 = vld [vmem:[#allocation11 + $0x28] sm:$0xf]
    %v372 = vld [vmem:[#allocation11 + $0x2c] sm:$0xf]
    %v373 = vld [vmem:[#allocation11 + $0x30] sm:$0xf]
    %v374 = vld [vmem:[#allocation11 + $0x34] sm:$0xf]
    %v375 = vld [vmem:[#allocation11 + $0x38] sm:$0xf]
    %v376 = vld [vmem:[#allocation11 + $0x3c] sm:$0xf]
    %v377 = vld [vmem:[%s8] sm:$0x1]
    %v379 = vperm.slane %v377, 0
    %v397 = vunpack.c.l.b16 %v361
    %v398 = vunpack.c.l.b16 %v362
    %v399 = vunpack.c.l.b16 %v363
    %v400 = vunpack.c.l.b16 %v364
    %v401 = vunpack.c.l.b16 %v365
    %v402 = vunpack.c.l.b16 %v366
    %v403 = vunpack.c.l.b16 %v367
    %v404 = vunpack.c.l.b16 %v368
    %v405 = vunpack.c.l.b16 %v369
    %v406 = vunpack.c.l.b16 %v370
    %v407 = vunpack.c.l.b16 %v371
    %v408 = vunpack.c.l.b16 %v372
    %v409 = vunpack.c.l.b16 %v373
    %v410 = vunpack.c.l.b16 %v374
    %v411 = vunpack.c.l.b16 %v375
    %v412 = vunpack.c.l.b16 %v376
    %v413 = vpack.c.b16 %v398, %v397
    %v414 = vpack.c.b16 %v400, %v399
    %v415 = vpack.c.b16 %v402, %v401
    %v416 = vpack.c.b16 %v404, %v403
    %v417 = vpack.c.b16 %v406, %v405
    %v418 = vpack.c.b16 %v408, %v407
    %v419 = vpack.c.b16 %v410, %v409
    %v420 = vpack.c.b16 %v412, %v411
    %429 = vmatpush.bf16.msra.mxu0 %v420
    %430 = vmatpush.bf16.msra.mxu0 %v419
    %431 = vmatpush.bf16.msra.mxu0 %v418
    %432 = vmatpush.bf16.msra.mxu0 %v417
    %433 = vmatpush.bf16.msra.mxu0 %v416
    %434 = vmatpush.bf16.msra.mxu0 %v415
    %435 = vmatpush.bf16.msra.mxu0 %v414
    %436 = vmatpush.bf16.msra.mxu0 %v413
    %437 = vmatmul.bf16.gmra.mxu0 %v360
    %v438 = vpop.f32.mrf.mxu0
    %v439 = vadd.f32 %v379, %v438
    %v440 = vpop.f32.mrf.mxu0
    %441 = vdwg.mxu0
    %s442 = sld [smem:[#allocation2]]
    %v443 = vld [vmem:[#allocation6] sm:$0xff]
    %v444 = vstv %s442
    %v445 = vmul.f32 %v444, %v439
    %v446 = vadd.f32 %v443, %v445
    %447 = vst [vmem:[#allocation12] sm:$0xff] %v446
    // Predicated region
    $region58: #{tpu_custom_call.1} parent=1 // pred_check
      _
    $region59: #{tpu_custom_call.1} parent=1 // pred_check_branch
      %449 = sbr.rel (0) target = $region61
    $region60: #{tpu_custom_call.1} parent=1 // pred_region
      %451 = vsyncadd [#allocation5], 0
      %s453 = sshll.u32 [#allocation12], 4
      %s454 = int_to_ptr.vmem [resolvable:$true] %s453
      %s455 = sshll.u32 %s9, 4
      %s456 = int_to_ptr.hbm [resolvable:$true] %s455
      %458 = dma.vmem_to_hbm [thread:$0]  %s454, 128, %s456, [#allocation5]
    $region61: #{tpu_custom_call.1} parent=1 // pred_fallthru
      _
    // Predicated region
    $region62: #{tpu_custom_call.1} parent=1 // pred_check
      _
    $region63: #{tpu_custom_call.1} parent=1 // pred_check_branch
      %460 = sbr.rel (0) target = $region65
    $region64: #{tpu_custom_call.1} parent=1 // pred_region
      %462 = dma.done [#allocation5], 128
    $region65: #{tpu_custom_call.1} parent=1 // pred_fallthru
      _
    %463 = vsyncpa [#allocation4], 1
    %464 = vsyncpa [#allocation7], 1
    %465 = vsyncpa [#allocation10], 1
    %466 = vsyncpa [#allocation5], 1

</llo_original>
